<compile_context>
chip_gen: v7x
topology: tpu7x:2x2x1
jax: 0.10.0
libtpu: 0.0.40
codegen_flags: <defaults>
</compile_context>

<pallas_src>
import jax
import jax.numpy as jnp
from jax.experimental import pallas as pl
from jax.experimental.pallas import tpu as pltpu


def _round_up(x, m):
    return (x + m - 1) // m * m


def _pick_batch_tiling(B, block_b, row_mult):
    """Even batch split so the last tile isn't mostly dead padding."""
    n_tiles = max(1, -(-B // block_b))                 # ceil(B / block_b)
    btile = _round_up(-(-B // n_tiles), row_mult)      # ceil(B / n_tiles), sublane-aligned
    b_pad = n_tiles * btile
    return btile, b_pad, n_tiles


def _mlp2mod_kernel(x1_ref, x2_ref, wv_ref, wt_ref, b1_ref, wcf_ref, bcf_ref, o_ref):
    hidden = wv_ref.shape[1]
    cdt = wv_ref.dtype                                  # compute/operand dtype (f32)

    # Branch 1: Linear (BN folded into wv/b1) + ReLU.  f32 accumulation on the MXU.
    h1 = jnp.dot(x1_ref[...].astype(cdt), wv_ref[...],
                 preferred_element_type=jnp.float32)
    h1 = jnp.maximum(h1 + b1_ref[:, :hidden], 0.0)

    # Branch 2.
    h2 = jnp.dot(x2_ref[...].astype(cdt), wt_ref[...],
                 preferred_element_type=jnp.float32)
    h2 = jnp.maximum(h2 + b1_ref[:, hidden:], 0.0)

    # TODO(synk): Dropout(0.5) is eval-mode identity here; training-mode RNG masking
    # is not implemented in this kernel.

    # Classifier on concat([h1, h2]) expressed as two partial dots (no concat needed).
    out = jnp.dot(h1.astype(cdt), wcf_ref[:hidden, :],
                  preferred_element_type=jnp.float32)
    out = out + jnp.dot(h2.astype(cdt), wcf_ref[hidden:, :],
                        preferred_element_type=jnp.float32)
    o_ref[...] = (out + bcf_ref[...]).astype(o_ref.dtype)


def prepare_params(params, *, eps=1e-5, weight_dtype=jnp.float32):
    """One-time (model load) BatchNorm folding + weight packing. Keep weights f32."""
    sv = params["vbn_gamma"] / jnp.sqrt(params["vbn_var"] + eps)
    st = params["tbn_gamma"] / jnp.sqrt(params["tbn_var"] + eps)
    wv = (params["vfc1_w"] * sv[None, :]).astype(weight_dtype)
    wt = (params["tfc1_w"] * st[None, :]).astype(weight_dtype)
    bv = params["vfc1_b"] * sv + (params["vbn_beta"] - params["vbn_mean"] * sv)
    bt = params["tfc1_b"] * st + (params["tbn_beta"] - params["tbn_mean"] * st)

    hidden = wv.shape[1]                                # 128 (derived, not hard-coded)
    n_cls = params["cf_w"].shape[1]                     # 3
    n_out = max(_round_up(n_cls, 8), 8)                 # tiny lane-masked output, 32 B/row f32

    b1 = jnp.concatenate([bv, bt]).reshape(1, 2 * hidden).astype(jnp.float32)
    wcf = (jnp.zeros((2 * hidden, n_out), weight_dtype)
           .at[:, :n_cls].set(params["cf_w"].astype(weight_dtype)))
    bcf = jnp.zeros((1, n_out), jnp.float32).at[:, :n_cls].set(params["cf_b"])

    return {"wv": wv, "wt": wt, "b1": b1, "wcf": wcf, "bcf": bcf, "n_cls": n_cls}


def multimlp_2mod_forward(x1, x2, folded, *, block_b=4096, vmem_limit_bytes=32 << 20):
    """Fused eval-mode forward. x1: (B, vdim), x2: (B, tdim) -> (B, 3).

    Pass bf16 x1/x2 to halve activation HBM traffic (v6e/v7x); accumulation stays f32.
    """
    B, vdim = x1.shape
    tdim = x2.shape[1]
    wv, wt, b1 = folded["wv"], folded["wt"], folded["b1"]
    wcf, bcf, n_cls = folded["wcf"], folded["bcf"], folded["n_cls"]
    hidden = wv.shape[1]
    n_out = wcf.shape[1]

    # Sublane packing multiple: 8 for 32-bit, 16 for bf16, 32 for int8/fp8.
    itemsize = jnp.dtype(x1.dtype).itemsize
    row_mult = {4: 8, 2: 16, 1: 32}.get(itemsize, 8)

    btile, b_pad, _ = _pick_batch_tiling(B, block_b, row_mult)
    if b_pad != B:
        # Only the last-tile remainder is padded (rows are independent; sliced off below).
        x1 = jnp.pad(x1, ((0, b_pad - B), (0, 0)))
        x2 = jnp.pad(x2, ((0, b_pad - B), (0, 0)))

    out = pl.pallas_call(
        _mlp2mod_kernel,
        out_shape=jax.ShapeDtypeStruct((b_pad, n_out), jnp.float32),
        grid_spec=pltpu.PrefetchScalarGridSpec(
            num_scalar_prefetch=0,
            grid=(b_pad // btile,),
            in_specs=[
                pl.BlockSpec((btile, vdim), lambda i: (i, 0)),          # x1 tile (pipelined)
                pl.BlockSpec((btile, tdim), lambda i: (i, 0)),          # x2 tile (pipelined)
                pl.BlockSpec((vdim, hidden), lambda i: (0, 0)),         # wv (pinned)
                pl.BlockSpec((tdim, hidden), lambda i: (0, 0)),         # wt (pinned)
                pl.BlockSpec((1, 2 * hidden), lambda i: (0, 0)),        # b1 (pinned)
                pl.BlockSpec((2 * hidden, n_out), lambda i: (0, 0)),    # wcf (pinned)
                pl.BlockSpec((1, n_out), lambda i: (0, 0)),             # bcf (pinned)
            ],
            out_specs=pl.BlockSpec((btile, n_out), lambda i: (i, 0)),
        ),
        compiler_params=pltpu.CompilerParams(
            dimension_semantics=("parallel",),   # batch axis shards across v7x's 2 TCs
            vmem_limit_bytes=vmem_limit_bytes,   # plenty of headroom even at btile=8192
        ),
    )(x1, x2, wv, wt, b1, wcf, bcf)

    return out[:B, :n_cls]


def init_params(key, vdim, tdim):
    ks = jax.random.split(key, 16)

    def unif(k, shape, fan_in):
        bound = 1.0 / jnp.sqrt(fan_in)
        return jax.random.uniform(k, shape, jnp.float32, -bound, bound)

    return {
        # nn.Linear stores weight as (out, in); we keep (in, out) for x @ W.
        "vfc1_w": unif(ks[0], (vdim, 128), vdim),
        "vfc1_b": unif(ks[1], (128,), vdim),
        "tfc1_w": unif(ks[2], (tdim, 128), tdim),
        "tfc1_b": unif(ks[3], (128,), tdim),
        "vbn_gamma": 1.0 + 0.1 * jax.random.normal(ks[4], (128,), jnp.float32),
        "vbn_beta": 0.1 * jax.random.normal(ks[5], (128,), jnp.float32),
        "vbn_mean": 0.05 * jax.random.normal(ks[6], (128,), jnp.float32),
        "vbn_var": 1.0 + 0.1 * jax.random.uniform(ks[7], (128,), jnp.float32),
        "tbn_gamma": 1.0 + 0.1 * jax.random.normal(ks[8], (128,), jnp.float32),
        "tbn_beta": 0.1 * jax.random.normal(ks[9], (128,), jnp.float32),
        "tbn_mean": 0.05 * jax.random.normal(ks[10], (128,), jnp.float32),
        "tbn_var": 1.0 + 0.1 * jax.random.uniform(ks[11], (128,), jnp.float32),
        "cf_w": unif(ks[12], (256, 3), 256),
        "cf_b": unif(ks[13], (3,), 256),
    }


def reference_forward(x1, x2, p):
    eps = 1e-5
    h1 = x1 @ p["vfc1_w"] + p["vfc1_b"]
    h1 = (h1 - p["vbn_mean"]) / jnp.sqrt(p["vbn_var"] + eps) * p["vbn_gamma"] + p["vbn_beta"]
    h1 = jnp.maximum(h1, 0.0)
    h2 = x2 @ p["tfc1_w"] + p["tfc1_b"]
    h2 = (h2 - p["tbn_mean"]) / jnp.sqrt(p["tbn_var"] + eps) * p["tbn_gamma"] + p["tbn_beta"]
    h2 = jnp.maximum(h2, 0.0)
    return jnp.concatenate([h1, h2], axis=1) @ p["cf_w"] + p["cf_b"]


if __name__ == "__main__":
    key = jax.random.PRNGKey(0)
    k1, k2, kp = jax.random.split(key, 3)

    B, vdim, tdim = 8, 32, 48
    x1 = jax.random.normal(k1, (B, vdim), jnp.float32)
    x2 = jax.random.normal(k2, (B, tdim), jnp.float32)
    params = init_params(kp, vdim, tdim)
    folded = prepare_params(params)          # one-time BN folding / weight packing

    ref = jax.block_until_ready(reference_forward(x1, x2, params))

    # f32 activation path (tight tolerance).
    out = jax.block_until_ready(multimlp_2mod_forward(x1, x2, folded))
    assert out.shape == (B, 3), out.shape
    assert jnp.allclose(out, ref, atol=1e-4, rtol=1e-4), (
        f"f32 max abs err {jnp.max(jnp.abs(out - ref))}")

    # bf16 activation path (v6e/v7x HBM-traffic optimization); weights stay f32.
    out_bf16 = jax.block_until_ready(
        multimlp_2mod_forward(x1.astype(jnp.bfloat16), x2.astype(jnp.bfloat16), folded))
    assert out_bf16.shape == (B, 3), out_bf16.shape
    assert jnp.allclose(out_bf16, ref, atol=1e-1, rtol=1e-1), (
        f"bf16 max abs err {jnp.max(jnp.abs(out_bf16 - ref))}")

    # Non-multiple batch (exercises remainder padding + slicing).
    B2 = 13
    x1b = jax.random.normal(jax.random.PRNGKey(1), (B2, vdim), jnp.float32)
    x2b = jax.random.normal(jax.random.PRNGKey(2), (B2, tdim), jnp.float32)
    ref_b = jax.block_until_ready(reference_forward(x1b, x2b, params))
    out_b = jax.block_until_ready(multimlp_2mod_forward(x1b, x2b, folded))
    assert out_b.shape == (B2, 3), out_b.shape
    assert jnp.allclose(out_b, ref_b, atol=1e-4, rtol=1e-4), (
        f"ragged-batch max abs err {jnp.max(jnp.abs(out_b - ref_b))}")

    print("KERNEL_OK")
</pallas_src>

<mosaic_0001>
module attributes {stable_mosaic.version = 11 : i64} {
  func.func @_mlp2mod_kernel(%arg0: i32, %arg1: memref<8x32xf32, #tpu.memory_space<vmem>>, %arg2: memref<8x48xf32, #tpu.memory_space<vmem>>, %arg3: memref<32x128xf32, #tpu.memory_space<vmem>>, %arg4: memref<48x128xf32, #tpu.memory_space<vmem>>, %arg5: memref<1x256xf32, #tpu.memory_space<vmem>>, %arg6: memref<256x8xf32, #tpu.memory_space<vmem>>, %arg7: memref<1x8xf32, #tpu.memory_space<vmem>>, %arg8: memref<8x8xf32, #tpu.memory_space<vmem>>) attributes {dimension_semantics = [#tpu.dimension_semantics<parallel>], iteration_bounds = array<i64: 1>, scalar_prefetch = 0 : i64, scratch_operands = 0 : i64, tpu.core_type = #tpu.core_type<tc>, window_params = [{transform_indices = @transform_0, window_bounds = array<i64: 8, 32>}, {transform_indices = @transform_1, window_bounds = array<i64: 8, 48>}, {pipeline_mode = #tpu.pipeline_mode<synchronous>, transform_indices = @transform_2, window_bounds = array<i64: 32, 128>}, {pipeline_mode = #tpu.pipeline_mode<synchronous>, transform_indices = @transform_3, window_bounds = array<i64: 48, 128>}, {pipeline_mode = #tpu.pipeline_mode<synchronous>, transform_indices = @transform_4, window_bounds = array<i64: 1, 256>}, {pipeline_mode = #tpu.pipeline_mode<synchronous>, transform_indices = @transform_5, window_bounds = array<i64: 256, 8>}, {pipeline_mode = #tpu.pipeline_mode<synchronous>, transform_indices = @transform_6, window_bounds = array<i64: 1, 8>}, {transform_indices = @transform_7, window_bounds = array<i64: 8, 8>}]} {
    %c0 = arith.constant 0 : index
    %c0_0 = arith.constant 0 : index
    %0 = vector.load %arg1[%c0, %c0_0] : memref<8x32xf32, #tpu.memory_space<vmem>>, vector<8x32xf32>
    %c0_1 = arith.constant 0 : index
    %c0_2 = arith.constant 0 : index
    %1 = vector.load %arg3[%c0_1, %c0_2] : memref<32x128xf32, #tpu.memory_space<vmem>>, vector<32x128xf32>
    %cst = arith.constant dense<0.000000e+00> : vector<8x128xf32>
    %2 = tpu.matmul %0, %1, %cst {dimension_numbers = #tpu.dot_dimension_numbers<[1], [0], [0], [1], [0, 0, 1, 1], [], []>} : vector<8x32xf32>, vector<32x128xf32>, vector<8x128xf32> -> vector<8x128xf32>
    %c0_3 = arith.constant 0 : index
    %c0_4 = arith.constant 0 : index
    %3 = vector.load %arg5[%c0_3, %c0_4] : memref<1x256xf32, #tpu.memory_space<vmem>>, vector<1x128xf32>
    %4 = vector.broadcast %3 : vector<1x128xf32> to vector<8x128xf32>
    %5 = arith.addf %2, %4 : vector<8x128xf32>
    %cst_5 = arith.constant 0.000000e+00 : f32
    %6 = vector.broadcast %cst_5 : f32 to vector<8x128xf32>
    %7 = arith.maximumf %5, %6 : vector<8x128xf32>
    %c0_6 = arith.constant 0 : index
    %c0_7 = arith.constant 0 : index
    %8 = vector.load %arg2[%c0_6, %c0_7] : memref<8x48xf32, #tpu.memory_space<vmem>>, vector<8x48xf32>
    %c0_8 = arith.constant 0 : index
    %c0_9 = arith.constant 0 : index
    %9 = vector.load %arg4[%c0_8, %c0_9] : memref<48x128xf32, #tpu.memory_space<vmem>>, vector<48x128xf32>
    %cst_10 = arith.constant dense<0.000000e+00> : vector<8x128xf32>
    %10 = tpu.matmul %8, %9, %cst_10 {dimension_numbers = #tpu.dot_dimension_numbers<[1], [0], [0], [1], [0, 0, 1, 1], [], []>} : vector<8x48xf32>, vector<48x128xf32>, vector<8x128xf32> -> vector<8x128xf32>
    %c0_11 = arith.constant 0 : index
    %c128 = arith.constant 128 : index
    %11 = vector.load %arg5[%c0_11, %c128] : memref<1x256xf32, #tpu.memory_space<vmem>>, vector<1x128xf32>
    %12 = vector.broadcast %11 : vector<1x128xf32> to vector<8x128xf32>
    %13 = arith.addf %10, %12 : vector<8x128xf32>
    %cst_12 = arith.constant 0.000000e+00 : f32
    %14 = vector.broadcast %cst_12 : f32 to vector<8x128xf32>
    %15 = arith.maximumf %13, %14 : vector<8x128xf32>
    %c0_13 = arith.constant 0 : index
    %c0_14 = arith.constant 0 : index
    %16 = vector.load %arg6[%c0_13, %c0_14] : memref<256x8xf32, #tpu.memory_space<vmem>>, vector<128x8xf32>
    %cst_15 = arith.constant dense<0.000000e+00> : vector<8x8xf32>
    %17 = tpu.matmul %7, %16, %cst_15 {dimension_numbers = #tpu.dot_dimension_numbers<[1], [0], [0], [1], [0, 0, 1, 1], [], []>} : vector<8x128xf32>, vector<128x8xf32>, vector<8x8xf32> -> vector<8x8xf32>
    %c128_16 = arith.constant 128 : index
    %c0_17 = arith.constant 0 : index
    %18 = vector.load %arg6[%c128_16, %c0_17] : memref<256x8xf32, #tpu.memory_space<vmem>>, vector<128x8xf32>
    %cst_18 = arith.constant dense<0.000000e+00> : vector<8x8xf32>
    %19 = tpu.matmul %15, %18, %cst_18 {dimension_numbers = #tpu.dot_dimension_numbers<[1], [0], [0], [1], [0, 0, 1, 1], [], []>} : vector<8x128xf32>, vector<128x8xf32>, vector<8x8xf32> -> vector<8x8xf32>
    %20 = arith.addf %17, %19 : vector<8x8xf32>
    %c0_19 = arith.constant 0 : index
    %c0_20 = arith.constant 0 : index
    %21 = vector.load %arg7[%c0_19, %c0_20] : memref<1x8xf32, #tpu.memory_space<vmem>>, vector<1x8xf32>
    %22 = vector.broadcast %21 : vector<1x8xf32> to vector<8x8xf32>
    %23 = arith.addf %20, %22 : vector<8x8xf32>
    %c0_21 = arith.constant 0 : index
    %c0_22 = arith.constant 0 : index
    %24 = vector.load %arg8[%c0_21, %c0_22] : memref<8x8xf32, #tpu.memory_space<vmem>>, vector<8x8xf32>
    tpu.vector_store %arg8[%c0_21, %c0_22], %23 {strides = array<i32>} : memref<8x8xf32, #tpu.memory_space<vmem>>, vector<8x8xf32>,
    return
  }
  func.func @transform_0(%arg0: i32) -> (i32, i32) {
    %c0_i32 = arith.constant 0 : i32
    %c0_i32_0 = arith.constant 0 : i32
    return %arg0, %c0_i32 : i32, i32
  }
  func.func @transform_1(%arg0: i32) -> (i32, i32) {
    %c0_i32 = arith.constant 0 : i32
    %c0_i32_0 = arith.constant 0 : i32
    return %arg0, %c0_i32 : i32, i32
  }
  func.func @transform_2(%arg0: i32) -> (i32, i32) {
    %c0_i32 = arith.constant 0 : i32
    %c0_i32_0 = arith.constant 0 : i32
    %c0_i32_1 = arith.constant 0 : i32
    return %c0_i32, %c0_i32_0 : i32, i32
  }
  func.func @transform_3(%arg0: i32) -> (i32, i32) {
    %c0_i32 = arith.constant 0 : i32
    %c0_i32_0 = arith.constant 0 : i32
    %c0_i32_1 = arith.constant 0 : i32
    return %c0_i32, %c0_i32_0 : i32, i32
  }
  func.func @transform_4(%arg0: i32) -> (i32, i32) {
    %c0_i32 = arith.constant 0 : i32
    %c0_i32_0 = arith.constant 0 : i32
    %c0_i32_1 = arith.constant 0 : i32
    return %c0_i32, %c0_i32_0 : i32, i32
  }
  func.func @transform_5(%arg0: i32) -> (i32, i32) {
    %c0_i32 = arith.constant 0 : i32
    %c0_i32_0 = arith.constant 0 : i32
    %c0_i32_1 = arith.constant 0 : i32
    return %c0_i32, %c0_i32_0 : i32, i32
  }
  func.func @transform_6(%arg0: i32) -> (i32, i32) {
    %c0_i32 = arith.constant 0 : i32
    %c0_i32_0 = arith.constant 0 : i32
    %c0_i32_1 = arith.constant 0 : i32
    return %c0_i32, %c0_i32_0 : i32, i32
  }
  func.func @transform_7(%arg0: i32) -> (i32, i32) {
    %c0_i32 = arith.constant 0 : i32
    %c0_i32_0 = arith.constant 0 : i32
    return %arg0, %c0_i32 : i32, i32
  }
}

</mosaic_0001>

<llo_original>
// kernel: tpu_custom_call.1
$region0: #{tpu_custom_call.1}
  #allocation0 [shape = 'u32[]', space=smem, size = 0x4, offset = 0x4, fixed_abs, tag = 'smem constant byte address 0x4 - core index']
  #allocation1 [shape = 'u32[144,128]{1,0:T(1,128)}', space=vmem, size = 0x12000, scoped, tag = 'internal scratch']
  %s0 = inlined_call_operand.vmem [shape: f32[8,32], index: 0, kind: input, shape index: {}]
  %s1 = inlined_call_operand.vmem [shape: f32[8,48], index: 1, kind: input, shape index: {}]
  %s2 = inlined_call_operand.vmem [shape: f32[32,128], index: 2, kind: input, shape index: {}]
  %s3 = inlined_call_operand.vmem [shape: f32[48,128], index: 3, kind: input, shape index: {}]
  %s4 = inlined_call_operand.vmem [shape: f32[1,256], index: 4, kind: input, shape index: {}]
  %s5 = inlined_call_operand.vmem [shape: f32[256,8], index: 5, kind: input, shape index: {}]
  %s6 = inlined_call_operand.vmem [shape: f32[1,8], index: 6, kind: input, shape index: {}]
  %s7 = inlined_call_operand.hbm [shape: f32[8,8], index: 7, kind: output, shape index: {}]
  %s8 = sld [smem:[#allocation0]]
  $region38: #{tpu_custom_call.1} parent=0
    _
  %s10 = ssub.s32 1, %s8
  %s11 = scalar_select 0, %s10, %s8
  $region1: #{tpu_custom_call.1} parent=0
    #allocation2 [shape = 'u8[4096]{0}', space=vmem, size = 0x1000, scoped, tag = 'output window, operand 0, single buffered']
    #allocation3 [shape = 's32[1]{0}', space=sflag, size = 0x4, scoped, tag = 'scoped memory for tpu_custom_call.1']
    %12 = vsyncpa [#allocation3], 0
    // Predicated region
    $region2: #{tpu_custom_call.1} parent=1 // pred_check
      _
    $region3: #{tpu_custom_call.1} parent=1 // pred_check_branch
      %14 = sbr.rel (0) target = $region5
    $region4: #{tpu_custom_call.1} parent=1 // pred_region
      _
    $region5: #{tpu_custom_call.1} parent=1 // pred_fallthru
      _
    // Predicated region
    $region6: #{tpu_custom_call.1} parent=1 // pred_check
      _
    $region7: #{tpu_custom_call.1} parent=1 // pred_check_branch
      %16 = sbr.rel (0) target = $region9
    $region8: #{tpu_custom_call.1} parent=1 // pred_region
      _
    $region9: #{tpu_custom_call.1} parent=1 // pred_fallthru
      _
    // Predicated region
    $region10: #{tpu_custom_call.1} parent=1 // pred_check
      _
    $region11: #{tpu_custom_call.1} parent=1 // pred_check_branch
      %18 = sbr.rel (0) target = $region13
    $region12: #{tpu_custom_call.1} parent=1 // pred_region
      _
    $region13: #{tpu_custom_call.1} parent=1 // pred_fallthru
      _
    // Predicated region
    $region14: #{tpu_custom_call.1} parent=1 // pred_check
      _
    $region15: #{tpu_custom_call.1} parent=1 // pred_check_branch
      %20 = sbr.rel (0) target = $region17
    $region16: #{tpu_custom_call.1} parent=1 // pred_region
      _
    $region17: #{tpu_custom_call.1} parent=1 // pred_fallthru
      _
    // Predicated region
    $region18: #{tpu_custom_call.1} parent=1 // pred_check
      _
    $region19: #{tpu_custom_call.1} parent=1 // pred_check_branch
      %22 = sbr.rel (0) target = $region21
    $region20: #{tpu_custom_call.1} parent=1 // pred_region
      _
    $region21: #{tpu_custom_call.1} parent=1 // pred_fallthru
      _
    // Predicated region
    $region22: #{tpu_custom_call.1} parent=1 // pred_check
      _
    $region23: #{tpu_custom_call.1} parent=1 // pred_check_branch
      %24 = sbr.rel (0) target = $region25
    $region24: #{tpu_custom_call.1} parent=1 // pred_region
      _
    $region25: #{tpu_custom_call.1} parent=1 // pred_fallthru
      _
    // Predicated region
    $region26: #{tpu_custom_call.1} parent=1 // pred_check
      _
    $region27: #{tpu_custom_call.1} parent=1 // pred_check_branch
      %26 = sbr.rel (0) target = $region29
    $region28: #{tpu_custom_call.1} parent=1 // pred_region
      _
    $region29: #{tpu_custom_call.1} parent=1 // pred_fallthru
      _
    %v27 = vld [vmem:[%s0] sm:$0xff]
    %v28 = vld [vmem:[%s2] sm:$0xff]
    %v29 = vld [vmem:[%s2 + $0x8] sm:$0xff]
    %v30 = vld [vmem:[%s2 + $0x10] sm:$0xff]
    %v31 = vld [vmem:[%s2 + $0x18] sm:$0xff]
    %v32 = vld [vmem:[%s4] sm:$0x1]
    %v34 = vlaneseq
    %v35 = vshrl.u32 %v34, 7
    %v36 = vsub.s32 0, %v35
    %v37 = vrot.slane %v32, %v36
    %vm39 = vcmask 261120
    %v41 = vsel %vm39, %v27, 0
    %43 = vmatprep.subr.mxu0 0.0
    %44 = vmatpush1.msra.mxu0 %v28
    %45 = vmatprep.subr.mxu0 0.0
    %46 = vmatpush1.msra.mxu0 %v29
    %47 = vmatprep.subr.mxu0 0.0
    %48 = vmatpush1.msra.mxu0 %v30
    %49 = vmatprep.subr.mxu0 0.0
    %50 = vmatpush1.msra.mxu0 %v31
    %51 = vmatprep.subr.mxu0 0.0
    %52 = vmatpush1.msra.mxu0 0.0
    %53 = vmatprep.subr.mxu0 0.0
    %54 = vmatpush1.msra.mxu0 0.0
    %55 = vmatprep.subr.mxu0 0.0
    %56 = vmatpush1.msra.mxu0 0.0
    %57 = vmatprep.subr.mxu0 0.0
    %58 = vmatpush1.msra.mxu0 0.0
    %59 = vmatprep.subr.mxu0 0.0
    %60 = vmatpush1.msra.mxu0 0.0
    %61 = vmatprep.subr.mxu0 0.0
    %62 = vmatpush1.msra.mxu0 0.0
    %63 = vmatprep.subr.mxu0 0.0
    %64 = vmatpush1.msra.mxu0 0.0
    %65 = vmatprep.subr.mxu0 0.0
    %66 = vmatpush1.msra.mxu0 0.0
    %67 = vmatprep.subr.mxu0 0.0
    %68 = vmatpush1.msra.mxu0 0.0
    %69 = vmatprep.subr.mxu0 0.0
    %70 = vmatpush1.msra.mxu0 0.0
    %71 = vmatprep.subr.mxu0 0.0
    %72 = vmatpush1.msra.mxu0 0.0
    %73 = vmatprep.subr.mxu0 0.0
    %74 = vmatpush1.msra.mxu0 0.0
    %75 = vmatprep.subr.mxu0 0.0
    %76 = vmatpush1.msra.mxu0 0.0
    %77 = vmatprep.subr.mxu0 0.0
    %78 = vmatpush1.msra.mxu0 0.0
    %79 = vmatprep.subr.mxu0 0.0
    %80 = vmatpush1.msra.mxu0 0.0
    %81 = vmatprep.subr.mxu0 0.0
    %82 = vmatpush1.msra.mxu0 0.0
    %83 = vmatprep.subr.mxu0 0.0
    %84 = vmatpush1.msra.mxu0 0.0
    %85 = vmatprep.subr.mxu0 0.0
    %86 = vmatpush1.msra.mxu0 0.0
    %87 = vmatprep.subr.mxu0 0.0
    %88 = vmatpush1.msra.mxu0 0.0
    %89 = vmatprep.subr.mxu0 0.0
    %90 = vmatpush1.msra.mxu0 0.0
    %91 = vmatprep.subr.mxu0 0.0
    %92 = vmatpush1.msra.mxu0 0.0
    %93 = vmatprep.subr.mxu0 0.0
    %94 = vmatpush1.msra.mxu0 0.0
    %95 = vmatprep.subr.mxu0 0.0
    %96 = vmatpush1.msra.mxu0 0.0
    %97 = vmatprep.subr.mxu0 0.0
    %98 = vmatpush1.msra.mxu0 0.0
    %99 = vmatprep.subr.mxu0 0.0
    %100 = vmatpush1.msra.mxu0 0.0
    %101 = vmatprep.subr.mxu0 0.0
    %102 = vmatpush1.msra.mxu0 0.0
    %103 = vmatprep.subr.mxu0 0.0
    %104 = vmatpush1.msra.mxu0 0.0
    %105 = vmatprep.subr.mxu0 0.0
    %106 = vmatpush1.msra.mxu0 0.0
    %107 = vmatprep.mubr.f32.mxu0 0.0
    %108 = vmatmul.mubr.f32.gmra.mrb[0].mxu0 %v41
    %v109 = vpop.f32.mrb[0].mxu0
    %v110 = vadd.f32 %v37, %v109
    %v111 = vpop.f32.mrb[0].mxu0
    %112 = vdwg.mxu0
    %v113 = vmax.f32 %v110, 0.0
    %v114 = vld [vmem:[%s1] sm:$0xff]
    %v115 = vld [vmem:[%s3] sm:$0xff]
    %v116 = vld [vmem:[%s3 + $0x8] sm:$0xff]
    %v117 = vld [vmem:[%s3 + $0x10] sm:$0xff]
    %v118 = vld [vmem:[%s3 + $0x18] sm:$0xff]
    %v119 = vld [vmem:[%s3 + $0x20] sm:$0xff]
    %v120 = vld [vmem:[%s3 + $0x28] sm:$0xff]
    %v121 = vld [vmem:[%s4 + $0x1] sm:$0x1]
    %v123 = vlaneseq
    %v124 = vshrl.u32 %v123, 7
    %v125 = vsub.s32 0, %v124
    %v126 = vrot.slane %v121, %v125
    %vm128 = vcmask 392192
    %v130 = vsel %vm128, %v114, 0
    %132 = vmatprep.subr.mxu0 0.0
    %133 = vmatpush1.msra.mxu0 %v115
    %134 = vmatprep.subr.mxu0 0.0
    %135 = vmatpush1.msra.mxu0 %v116
    %136 = vmatprep.subr.mxu0 0.0
    %137 = vmatpush1.msra.mxu0 %v117
    %138 = vmatprep.subr.mxu0 0.0
    %139 = vmatpush1.msra.mxu0 %v118
    %140 = vmatprep.subr.mxu0 0.0
    %141 = vmatpush1.msra.mxu0 %v119
    %142 = vmatprep.subr.mxu0 0.0
    %143 = vmatpush1.msra.mxu0 %v120
    %144 = vmatprep.subr.mxu0 0.0
    %145 = vmatpush1.msra.mxu0 0.0
    %146 = vmatprep.subr.mxu0 0.0
    %147 = vmatpush1.msra.mxu0 0.0
    %148 = vmatprep.subr.mxu0 0.0
    %149 = vmatpush1.msra.mxu0 0.0
    %150 = vmatprep.subr.mxu0 0.0
    %151 = vmatpush1.msra.mxu0 0.0
    %152 = vmatprep.subr.mxu0 0.0
    %153 = vmatpush1.msra.mxu0 0.0
    %154 = vmatprep.subr.mxu0 0.0
    %155 = vmatpush1.msra.mxu0 0.0
    %156 = vmatprep.subr.mxu0 0.0
    %157 = vmatpush1.msra.mxu0 0.0
    %158 = vmatprep.subr.mxu0 0.0
    %159 = vmatpush1.msra.mxu0 0.0
    %160 = vmatprep.subr.mxu0 0.0
    %161 = vmatpush1.msra.mxu0 0.0
    %162 = vmatprep.subr.mxu0 0.0
    %163 = vmatpush1.msra.mxu0 0.0
    %164 = vmatprep.subr.mxu0 0.0
    %165 = vmatpush1.msra.mxu0 0.0
    %166 = vmatprep.subr.mxu0 0.0
    %167 = vmatpush1.msra.mxu0 0.0
    %168 = vmatprep.subr.mxu0 0.0
    %169 = vmatpush1.msra.mxu0 0.0
    %170 = vmatprep.subr.mxu0 0.0
    %171 = vmatpush1.msra.mxu0 0.0
    %172 = vmatprep.subr.mxu0 0.0
    %173 = vmatpush1.msra.mxu0 0.0
    %174 = vmatprep.subr.mxu0 0.0
    %175 = vmatpush1.msra.mxu0 0.0
    %176 = vmatprep.subr.mxu0 0.0
    %177 = vmatpush1.msra.mxu0 0.0
    %178 = vmatprep.subr.mxu0 0.0
    %179 = vmatpush1.msra.mxu0 0.0
    %180 = vmatprep.subr.mxu0 0.0
    %181 = vmatpush1.msra.mxu0 0.0
    %182 = vmatprep.subr.mxu0 0.0
    %183 = vmatpush1.msra.mxu0 0.0
    %184 = vmatprep.subr.mxu0 0.0
    %185 = vmatpush1.msra.mxu0 0.0
    %186 = vmatprep.subr.mxu0 0.0
    %187 = vmatpush1.msra.mxu0 0.0
    %188 = vmatprep.subr.mxu0 0.0
    %189 = vmatpush1.msra.mxu0 0.0
    %190 = vmatprep.subr.mxu0 0.0
    %191 = vmatpush1.msra.mxu0 0.0
    %192 = vmatprep.subr.mxu0 0.0
    %193 = vmatpush1.msra.mxu0 0.0
    %194 = vmatprep.subr.mxu0 0.0
    %195 = vmatpush1.msra.mxu0 0.0
    %196 = vmatprep.mubr.f32.mxu0 0.0
    %197 = vmatmul.mubr.f32.gmra.mrb[0].mxu0 %v130
    %v198 = vpop.f32.mrb[0].mxu0
    %v199 = vadd.f32 %v126, %v198
    %v200 = vpop.f32.mrb[0].mxu0
    %201 = vdwg.mxu0
    %v202 = vmax.f32 %v199, 0.0
    %v203 = vld [vmem:[%s5] sm:$0xff]
    %v204 = vld [vmem:[%s5 + $0x8] sm:$0xff]
    %v205 = vld [vmem:[%s5 + $0x10] sm:$0xff]
    %v206 = vld [vmem:[%s5 + $0x18] sm:$0xff]
    %v207 = vld [vmem:[%s5 + $0x20] sm:$0xff]
    %v208 = vld [vmem:[%s5 + $0x28] sm:$0xff]
    %v209 = vld [vmem:[%s5 + $0x30] sm:$0xff]
    %v210 = vld [vmem:[%s5 + $0x38] sm:$0xff]
    %v211 = vld [vmem:[%s5 + $0x40] sm:$0xff]
    %v212 = vld [vmem:[%s5 + $0x48] sm:$0xff]
    %v213 = vld [vmem:[%s5 + $0x50] sm:$0xff]
    %v214 = vld [vmem:[%s5 + $0x58] sm:$0xff]
    %v215 = vld [vmem:[%s5 + $0x60] sm:$0xff]
    %v216 = vld [vmem:[%s5 + $0x68] sm:$0xff]
    %v217 = vld [vmem:[%s5 + $0x70] sm:$0xff]
    %v218 = vld [vmem:[%s5 + $0x78] sm:$0xff]
    %v219 = vld [vmem:[%s5 + $0x80] sm:$0xff]
    %v220 = vld [vmem:[%s5 + $0x88] sm:$0xff]
    %v221 = vld [vmem:[%s5 + $0x90] sm:$0xff]
    %v222 = vld [vmem:[%s5 + $0x98] sm:$0xff]
    %v223 = vld [vmem:[%s5 + $0xa0] sm:$0xff]
    %v224 = vld [vmem:[%s5 + $0xa8] sm:$0xff]
    %v225 = vld [vmem:[%s5 + $0xb0] sm:$0xff]
    %v226 = vld [vmem:[%s5 + $0xb8] sm:$0xff]
    %v227 = vld [vmem:[%s5 + $0xc0] sm:$0xff]
    %v228 = vld [vmem:[%s5 + $0xc8] sm:$0xff]
    %v229 = vld [vmem:[%s5 + $0xd0] sm:$0xff]
    %v230 = vld [vmem:[%s5 + $0xd8] sm:$0xff]
    %v231 = vld [vmem:[%s5 + $0xe0] sm:$0xff]
    %v232 = vld [vmem:[%s5 + $0xe8] sm:$0xff]
    %v233 = vld [vmem:[%s5 + $0xf0] sm:$0xff]
    %v234 = vld [vmem:[%s5 + $0xf8] sm:$0xff]
    %235 = vmatprep.subr.mxu0 0.0
    %236 = vmatpush1.msra.mxu0 %v219
    %237 = vmatprep.subr.mxu0 0.0
    %238 = vmatpush1.msra.mxu0 %v220
    %239 = vmatprep.subr.mxu0 0.0
    %240 = vmatpush1.msra.mxu0 %v221
    %241 = vmatprep.subr.mxu0 0.0
    %242 = vmatpush1.msra.mxu0 %v222
    %243 = vmatprep.subr.mxu0 0.0
    %244 = vmatpush1.msra.mxu0 %v223
    %245 = vmatprep.subr.mxu0 0.0
    %246 = vmatpush1.msra.mxu0 %v224
    %247 = vmatprep.subr.mxu0 0.0
    %248 = vmatpush1.msra.mxu0 %v225
    %249 = vmatprep.subr.mxu0 0.0
    %250 = vmatpush1.msra.mxu0 %v226
    %251 = vmatprep.subr.mxu0 0.0
    %252 = vmatpush1.msra.mxu0 %v227
    %253 = vmatprep.subr.mxu0 0.0
    %254 = vmatpush1.msra.mxu0 %v228
    %255 = vmatprep.subr.mxu0 0.0
    %256 = vmatpush1.msra.mxu0 %v229
    %257 = vmatprep.subr.mxu0 0.0
    %258 = vmatpush1.msra.mxu0 %v230
    %259 = vmatprep.subr.mxu0 0.0
    %260 = vmatpush1.msra.mxu0 %v231
    %261 = vmatprep.subr.mxu0 0.0
    %262 = vmatpush1.msra.mxu0 %v232
    %263 = vmatprep.subr.mxu0 0.0
    %264 = vmatpush1.msra.mxu0 %v233
    %265 = vmatprep.subr.mxu0 0.0
    %266 = vmatpush1.msra.mxu0 %v234
    %267 = vmatprep.subr.mxu0 0.0
    %268 = vmatpush1.msra.mxu0 0.0
    %269 = vmatprep.subr.mxu0 0.0
    %270 = vmatpush1.msra.mxu0 0.0
    %271 = vmatprep.subr.mxu0 0.0
    %272 = vmatpush1.msra.mxu0 0.0
    %273 = vmatprep.subr.mxu0 0.0
    %274 = vmatpush1.msra.mxu0 0.0
    %275 = vmatprep.subr.mxu0 0.0
    %276 = vmatpush1.msra.mxu0 0.0
    %277 = vmatprep.subr.mxu0 0.0
    %278 = vmatpush1.msra.mxu0 0.0
    %279 = vmatprep.subr.mxu0 0.0
    %280 = vmatpush1.msra.mxu0 0.0
    %281 = vmatprep.subr.mxu0 0.0
    %282 = vmatpush1.msra.mxu0 0.0
    %283 = vmatprep.subr.mxu0 0.0
    %284 = vmatpush1.msra.mxu0 0.0
    %285 = vmatprep.subr.mxu0 0.0
    %286 = vmatpush1.msra.mxu0 0.0
    %287 = vmatprep.subr.mxu0 0.0
    %288 = vmatpush1.msra.mxu0 0.0
    %289 = vmatprep.subr.mxu0 0.0
    %290 = vmatpush1.msra.mxu0 0.0
    %291 = vmatprep.subr.mxu0 0.0
    %292 = vmatpush1.msra.mxu0 0.0
    %293 = vmatprep.subr.mxu0 0.0
    %294 = vmatpush1.msra.mxu0 0.0
    %295 = vmatprep.subr.mxu0 0.0
    %296 = vmatpush1.msra.mxu0 0.0
    %297 = vmatprep.subr.mxu0 0.0
    %298 = vmatpush1.msra.mxu0 0.0
    %299 = vmatprep.mubr.f32.mxu0 0.0
    %300 = vmatmul.mubr.f32.gmra.mrb[0].mxu0 %v202
    %v301 = vpop.f32.mrb[0].mxu0
    %v302 = vadd.f32 0.0, %v301
    %v303 = vpop.f32.mrb[0].mxu0
    %304 = vdwg.mxu0
    %305 = vmatprep.subr.mxu0 0.0
    %306 = vmatpush1.msra.mxu0 %v203
    %307 = vmatprep.subr.mxu0 0.0
    %308 = vmatpush1.msra.mxu0 %v204
    %309 = vmatprep.subr.mxu0 0.0
    %310 = vmatpush1.msra.mxu0 %v205
    %311 = vmatprep.subr.mxu0 0.0
    %312 = vmatpush1.msra.mxu0 %v206
    %313 = vmatprep.subr.mxu0 0.0
    %314 = vmatpush1.msra.mxu0 %v207
    %315 = vmatprep.subr.mxu0 0.0
    %316 = vmatpush1.msra.mxu0 %v208
    %317 = vmatprep.subr.mxu0 0.0
    %318 = vmatpush1.msra.mxu0 %v209
    %319 = vmatprep.subr.mxu0 0.0
    %320 = vmatpush1.msra.mxu0 %v210
    %321 = vmatprep.subr.mxu0 0.0
    %322 = vmatpush1.msra.mxu0 %v211
    %323 = vmatprep.subr.mxu0 0.0
    %324 = vmatpush1.msra.mxu0 %v212
    %325 = vmatprep.subr.mxu0 0.0
    %326 = vmatpush1.msra.mxu0 %v213
    %327 = vmatprep.subr.mxu0 0.0
    %328 = vmatpush1.msra.mxu0 %v214
    %329 = vmatprep.subr.mxu0 0.0
    %330 = vmatpush1.msra.mxu0 %v215
    %331 = vmatprep.subr.mxu0 0.0
    %332 = vmatpush1.msra.mxu0 %v216
    %333 = vmatprep.subr.mxu0 0.0
    %334 = vmatpush1.msra.mxu0 %v217
    %335 = vmatprep.subr.mxu0 0.0
    %336 = vmatpush1.msra.mxu0 %v218
    %337 = vmatprep.subr.mxu0 0.0
    %338 = vmatpush1.msra.mxu0 0.0
    %339 = vmatprep.subr.mxu0 0.0
    %340 = vmatpush1.msra.mxu0 0.0
    %341 = vmatprep.subr.mxu0 0.0
    %342 = vmatpush1.msra.mxu0 0.0
    %343 = vmatprep.subr.mxu0 0.0
    %344 = vmatpush1.msra.mxu0 0.0
    %345 = vmatprep.subr.mxu0 0.0
    %346 = vmatpush1.msra.mxu0 0.0
    %347 = vmatprep.subr.mxu0 0.0
    %348 = vmatpush1.msra.mxu0 0.0
    %349 = vmatprep.subr.mxu0 0.0
    %350 = vmatpush1.msra.mxu0 0.0
    %351 = vmatprep.subr.mxu0 0.0
    %352 = vmatpush1.msra.mxu0 0.0
    %353 = vmatprep.subr.mxu0 0.0
    %354 = vmatpush1.msra.mxu0 0.0
    %355 = vmatprep.subr.mxu0 0.0
    %356 = vmatpush1.msra.mxu0 0.0
    %357 = vmatprep.subr.mxu0 0.0
    %358 = vmatpush1.msra.mxu0 0.0
    %359 = vmatprep.subr.mxu0 0.0
    %360 = vmatpush1.msra.mxu0 0.0
    %361 = vmatprep.subr.mxu0 0.0
    %362 = vmatpush1.msra.mxu0 0.0
    %363 = vmatprep.subr.mxu0 0.0
    %364 = vmatpush1.msra.mxu0 0.0
    %365 = vmatprep.subr.mxu0 0.0
    %366 = vmatpush1.msra.mxu0 0.0
    %367 = vmatprep.subr.mxu0 0.0
    %368 = vmatpush1.msra.mxu0 0.0
    %369 = vmatprep.mubr.f32.mxu0 0.0
    %370 = vmatmul.mubr.f32.gmra.mrb[0].mxu0 %v113
    %v371 = vpop.f32.mrb[0].mxu0
    %v372 = vadd.f32 %v302, %v371
    %v373 = vpop.f32.mrb[0].mxu0
    %374 = vdwg.mxu0
    %v375 = vld [vmem:[%s6] sm:$0x1]
    %v377 = vlaneseq
    %v378 = vshrl.u32 %v377, 7
    %v379 = vsub.s32 0, %v378
    %v380 = vrot.slane %v375, %v379
    %v382 = vadd.f32 %v372, %v380
    %vm383 = vcmask 64512
    %384 = vst.msk [vmem:[#allocation2] sm:$0xff] %vm383, %v382
    // Predicated region
    $region30: #{tpu_custom_call.1} parent=1 // pred_check
      _
    $region31: #{tpu_custom_call.1} parent=1 // pred_check_branch
      %386 = sbr.rel (0) target = $region33
    $region32: #{tpu_custom_call.1} parent=1 // pred_region
      %s388 = ssub.s32 128, 128
      %389 = vsyncadd [#allocation3], %s388
      %s391 = sshll.u32 [#allocation2], 4
      %s392 = int_to_ptr.vmem [resolvable:$true] %s391
      %394 = dma.vmem_to_hbm [thread:$0]  %s392, 128, %s7, [#allocation3]
    $region33: #{tpu_custom_call.1} parent=1 // pred_fallthru
      _
    // Predicated region
    $region34: #{tpu_custom_call.1} parent=1 // pred_check
      _
    $region35: #{tpu_custom_call.1} parent=1 // pred_check_branch
      %396 = sbr.rel (0) target = $region37
    $region36: #{tpu_custom_call.1} parent=1 // pred_region
      %397 = dma.done [#allocation3], 128
    $region37: #{tpu_custom_call.1} parent=1 // pred_fallthru
      _
    %398 = vsyncpa [#allocation3], 1

</llo_original>
